<compile_context>
chip_gen: v6e
topology: v6e:2x2x1
jax: 0.10.0
libtpu: 0.0.40
codegen_flags: <defaults>
</compile_context>

<pallas_src>
import functools

import jax
import jax.numpy as jnp
import numpy as np
from jax.experimental import pallas as pl
from jax.experimental.pallas import tpu as pltpu

LANES = 128  # lane-dense output slab width


# --------------------------------------------------------------------------
# Kernel 1: fused projection  h = x @ W_big + bias ,  p = x @ W_p
# Emits h in the K-stacked layout: rows [0:tb) = Hh slab, rows [tb:2tb) = Hl
# slab of this key block (each slab carries its own ones column for row sums).
# --------------------------------------------------------------------------
def proj_kernel(x_ref, wbig_ref, bias_ref, wp_ref, h_ref, p_ref, *, tb):
    x = x_ref[...]                                                    # (tb, Fin) f32
    h = jnp.dot(x, wbig_ref[...],
                preferred_element_type=jnp.float32) + bias_ref[...]  # (tb, 256)
    h_ref[0:tb, :] = h[:, :LANES].astype(h_ref.dtype)                # Hh rows (bf16)
    h_ref[tb:2 * tb, :] = h[:, LANES:].astype(h_ref.dtype)           # Hl rows (bf16)
    p_ref[...] = jnp.dot(x, wp_ref[...],                             # (tb, 2) f32
                         preferred_element_type=jnp.float32)


# --------------------------------------------------------------------------
# Kernel 2: compacted masked attention + aggregation (flash-style accumulator)
# 1-D grid over occupied (block_i, block_j) tiles, sorted by block_i.
# --------------------------------------------------------------------------
def attn_kernel(bi_ref, bj_ref, first_ref, last_ref,
                pq_ref, pt_ref, h_ref, m_ref, o_ref, acc_ref,
                *, f_out, alpha):
    s = pl.program_id(0)

    @pl.when(first_ref[s] == 1)          # first occupied tile of this row block
    def _init():
        acc_ref[...] = jnp.zeros_like(acc_ref)

    p_q = pq_ref[...]                     # (TM, 2) f32  [a.hh | a.hl] query rows
    p_k = pt_ref[...]                     # (2, TN) f32                key rows
    s_h = p_q[:, 0:1] - p_k[0:1, :]       # (TM, TN)  a.(hh_i - hh_j)
    s_l = p_q[:, 1:2] + p_k[1:2, :]       # (TM, TN)  a.(hl_i + hl_j)

    mf = m_ref[...].astype(jnp.float32)   # edge-count mask tile (from int8)

    def score(v):
        neg = jnp.where(v >= 0, v, alpha * v)         # leaky_relu
        e = jnp.exp(jnp.minimum(-neg, 80.0))          # clamp: no inf -> NaN later
        return (jnp.where(mf > 0, e, 0.0) * mf).astype(jnp.bfloat16)

    # Lane-concatenated scores -> one K=2*TN MXU matmul against the K-stacked
    # [Hh rows ; Hl rows] tile.  Each slab's ones column makes the same matmul
    # also produce the row sums (acc lanes 2*f_out, 2*f_out+1).
    e = jnp.concatenate([score(s_h), score(s_l)], axis=1)            # (TM, 2*TN)
    acc_ref[...] += jnp.dot(e, h_ref[...], preferred_element_type=jnp.float32)

    @pl.when(last_ref[s] == 1)            # last occupied tile of this row block
    def _finalize():
        acc = acc_ref[...]                                            # (TM, LANES)
        inv_h = 1.0 / (acc[:, 2 * f_out:2 * f_out + 1] + 1e-16)       # exact recip
        inv_l = 1.0 / (acc[:, 2 * f_out + 1:2 * f_out + 2] + 1e-16)
        lane = jax.lax.broadcasted_iota(jnp.int32, acc.shape, 1)
        scale = jnp.where(lane < f_out, inv_h,
                          jnp.where(lane < 2 * f_out, inv_l, 0.0))
        # Lane-dense (TM, 128) store; pad lanes are exactly zero (elu(0) = 0).
        o_ref[...] = jax.nn.elu(acc * scale)


# --------------------------------------------------------------------------
# Host-side parameter / graph preprocessing (per-graph, one-time glue)
# --------------------------------------------------------------------------
def build_packed_weights(w_high, w_low, a_low):
    f_in, f_out = w_high.shape
    assert 2 * f_out + 2 <= LANES, "f_out too large for single output slab"
    w_big = jnp.zeros((f_in, 2 * LANES), jnp.float32)
    w_big = w_big.at[:, 0:f_out].set(w_high)                             # Hh slab
    w_big = w_big.at[:, LANES + f_out:LANES + 2 * f_out].set(w_low)      # Hl slab
    bias = jnp.zeros((1, 2 * LANES), jnp.float32)
    bias = bias.at[0, 2 * f_out].set(1.0)                # ones column (high slab)
    bias = bias.at[0, LANES + 2 * f_out + 1].set(1.0)    # ones column (low slab)
    # a_low projections folded into the weights (one fused matmul).
    w_p = jnp.zeros((f_in, 2), jnp.float32)
    w_p = w_p.at[:, 0].set(w_high @ a_low[0])
    w_p = w_p.at[:, 1].set(w_low @ a_low[0])
    return w_big, bias, w_p


def build_graph_tensors(edge, n, tm, tn):
    """Dense int8 edge-count mask + compacted list of occupied tiles (numpy)."""
    e_np = np.asarray(edge)
    mask_np = np.zeros((n, n), np.int32)
    np.add.at(mask_np, (e_np[0], e_np[1]), 1)
    mask = jnp.asarray(np.minimum(mask_np, 127).astype(np.int8))

    counts = np.zeros((n // tm, n // tn), np.int64)
    np.add.at(counts, (e_np[0] // tm, e_np[1] // tn), 1)
    sel = counts > 0
    sel[:, 0] = True          # every row block appears -> its output gets written
    bi, bj = np.nonzero(sel)  # row-major: sorted by block-row, then block-col
    brk = bi[1:] != bi[:-1]
    first = np.concatenate([[True], brk]).astype(np.int32)
    last = np.concatenate([brk, [True]]).astype(np.int32)
    return (mask,
            jnp.asarray(bi.astype(np.int32)), jnp.asarray(bj.astype(np.int32)),
            jnp.asarray(first), jnp.asarray(last))


# --------------------------------------------------------------------------
# Forward wrapper
# --------------------------------------------------------------------------
def gat_forward(x, w_high, w_low, a_low, edge, *, alpha=0.2, tm=256, tn=128):
    n, f_in = x.shape
    f_out = w_high.shape[1]
    tm, tn = min(tm, n), min(tn, n)
    assert n % tm == 0 and n % tn == 0, "N must be divisible by the tile sizes"

    w_big, bias, w_p = build_packed_weights(w_high, w_low, a_low)
    mask, bi, bj, first, last = build_graph_tensors(edge, n, tm, tn)

    # ---- Kernel 1: projection (K-stacked h layout at key-block granularity) ----
    tb = tn
    h_stacked, p = pl.pallas_call(
        functools.partial(proj_kernel, tb=tb),
        out_shape=(jax.ShapeDtypeStruct((2 * n, LANES), jnp.bfloat16),
                   jax.ShapeDtypeStruct((n, 2), jnp.float32)),
        grid=(n // tb,),
        in_specs=[
            pl.BlockSpec((tb, f_in), lambda i: (i, 0)),
            pl.BlockSpec((f_in, 2 * LANES), lambda i: (0, 0)),
            pl.BlockSpec((1, 2 * LANES), lambda i: (0, 0)),
            pl.BlockSpec((f_in, 2), lambda i: (0, 0)),
        ],
        out_specs=(
            pl.BlockSpec((2 * tb, LANES), lambda i: (i, 0)),
            pl.BlockSpec((tb, 2), lambda i: (i, 0)),
        ),
        compiler_params=pltpu.CompilerParams(dimension_semantics=("parallel",)),
    )(x, w_big, bias, w_p)

    # p_row is p_col transposed -- tiny (N,2) transpose, no extra MXU work.
    p_t = p.T                                                          # (2, N)

    # ---- Kernel 2: compacted masked attention + aggregation -------------------
    nsteps = int(bi.shape[0])
    kernel = functools.partial(attn_kernel, f_out=f_out, alpha=alpha)
    out_padded = pl.pallas_call(
        kernel,
        out_shape=jax.ShapeDtypeStruct((n, LANES), jnp.float32),
        grid_spec=pltpu.PrefetchScalarGridSpec(
            num_scalar_prefetch=4,
            grid=(nsteps,),
            in_specs=[
                pl.BlockSpec((tm, 2), lambda s, bir, bjr, fr, lr: (bir[s], 0)),
                pl.BlockSpec((2, tn), lambda s, bir, bjr, fr, lr: (0, bjr[s])),
                pl.BlockSpec((2 * tn, LANES),
                             lambda s, bir, bjr, fr, lr: (bjr[s], 0)),
                pl.BlockSpec((tm, tn),
                             lambda s, bir, bjr, fr, lr: (bir[s], bjr[s])),
            ],
            out_specs=pl.BlockSpec((tm, LANES),
                                   lambda s, bir, bjr, fr, lr: (bir[s], 0)),
            scratch_shapes=[pltpu.VMEM((tm, LANES), jnp.float32)],
        ),
        compiler_params=pltpu.CompilerParams(
            dimension_semantics=("arbitrary",),
            vmem_limit_bytes=32 * 1024 * 1024,
        ),
    )(bi, bj, first, last, p, p_t, h_stacked, mask)

    return out_padded[:, :2 * f_out]


# --------------------------------------------------------------------------
# Pure-JAX reference (mirrors the sparse PyTorch path via segment sums)
# --------------------------------------------------------------------------
def ref_forward(x, w_high, w_low, a_low, edge, *, alpha=0.2):
    n = x.shape[0]
    hh = jnp.dot(x, w_high, precision="highest")
    hl = jnp.dot(x, w_low, precision="highest")
    sh = (hh[edge[0]] - hh[edge[1]]) @ a_low[0]
    sl = (hl[edge[0]] + hl[edge[1]]) @ a_low[0]
    lrelu = lambda v: jnp.where(v >= 0, v, alpha * v)
    ee_h = jnp.exp(-lrelu(sh))
    ee_l = jnp.exp(-lrelu(sl))
    seg = edge[0]
    rs_h = jax.ops.segment_sum(ee_h, seg, n)[:, None]
    rs_l = jax.ops.segment_sum(ee_l, seg, n)[:, None]
    hp_h = jax.ops.segment_sum(ee_h[:, None] * hh[edge[1]], seg, n) / (rs_h + 1e-16)
    hp_l = jax.ops.segment_sum(ee_l[:, None] * hl[edge[1]], seg, n) / (rs_l + 1e-16)
    return jax.nn.elu(jnp.concatenate([hp_h, hp_l], axis=1))


def xavier_normal(key, shape, gain):
    fan_in, fan_out = shape
    std = gain * (2.0 / (fan_in + fan_out)) ** 0.5
    return std * jax.random.normal(key, shape, jnp.float32)


if __name__ == "__main__":
    N, F_IN, F_OUT, E = 256, 32, 32, 2048
    ALPHA = 0.2  # leaky-relu negative slope

    key = jax.random.PRNGKey(0)
    k_x, k_wh, k_wl, k_a, k_e0, k_e1 = jax.random.split(key, 6)

    x = jax.random.normal(k_x, (N, F_IN), jnp.float32)
    W_high = xavier_normal(k_wh, (F_IN, F_OUT), gain=1.414)
    W_low = xavier_normal(k_wl, (F_IN, F_OUT), gain=1.414)
    a_low = xavier_normal(k_a, (1, F_OUT), gain=1.414)
    edge = jnp.stack(
        [jax.random.randint(k_e0, (E,), 0, N, jnp.int32),
         jax.random.randint(k_e1, (E,), 0, N, jnp.int32)],
        axis=0,
    )

    out = gat_forward(x, W_high, W_low, a_low, edge, alpha=ALPHA)
    out = jax.block_until_ready(out)

    ref = ref_forward(x, W_high, W_low, a_low, edge, alpha=ALPHA)
    # bf16 MXU inputs for the aggregation matmul -> 2e-2 tolerance vs f32 ref.
    np.testing.assert_allclose(np.asarray(out), np.asarray(ref), rtol=2e-2, atol=2e-2)

    print("KERNEL_OK")
</pallas_src>

<mosaic_0001>
module attributes {stable_mosaic.version = 11 : i64} {
  func.func @proj_kernel(%arg0: i32, %arg1: memref<128x32xf32, #tpu.memory_space<vmem>>, %arg2: memref<32x256xf32, #tpu.memory_space<vmem>>, %arg3: memref<1x256xf32, #tpu.memory_space<vmem>>, %arg4: memref<32x2xf32, #tpu.memory_space<vmem>>, %arg5: memref<256x128xbf16, #tpu.memory_space<vmem>>, %arg6: memref<128x2xf32, #tpu.memory_space<vmem>>) attributes {dimension_semantics = [#tpu.dimension_semantics<parallel>], iteration_bounds = array<i64: 2>, scalar_prefetch = 0 : i64, scratch_operands = 0 : i64, tpu.core_type = #tpu.core_type<tc>, window_params = [{transform_indices = @transform_0, window_bounds = array<i64: 128, 32>}, {pipeline_mode = #tpu.pipeline_mode<synchronous>, transform_indices = @transform_1, window_bounds = array<i64: 32, 256>}, {pipeline_mode = #tpu.pipeline_mode<synchronous>, transform_indices = @transform_2, window_bounds = array<i64: 1, 256>}, {pipeline_mode = #tpu.pipeline_mode<synchronous>, transform_indices = @transform_3, window_bounds = array<i64: 32, 2>}, {transform_indices = @transform_4, window_bounds = array<i64: 256, 128>}, {transform_indices = @transform_5, window_bounds = array<i64: 128, 2>}]} {
    %c0 = arith.constant 0 : index
    %c0_0 = arith.constant 0 : index
    %0 = vector.load %arg1[%c0, %c0_0] : memref<128x32xf32, #tpu.memory_space<vmem>>, vector<128x32xf32>
    %c0_1 = arith.constant 0 : index
    %c0_2 = arith.constant 0 : index
    %1 = vector.load %arg2[%c0_1, %c0_2] : memref<32x256xf32, #tpu.memory_space<vmem>>, vector<32x256xf32>
    %cst = arith.constant dense<0.000000e+00> : vector<128x256xf32>
    %2 = tpu.matmul %0, %1, %cst {dimension_numbers = #tpu.dot_dimension_numbers<[1], [0], [0], [1], [0, 0, 1, 1], [], []>} : vector<128x32xf32>, vector<32x256xf32>, vector<128x256xf32> -> vector<128x256xf32>
    %c0_3 = arith.constant 0 : index
    %c0_4 = arith.constant 0 : index
    %3 = vector.load %arg3[%c0_3, %c0_4] : memref<1x256xf32, #tpu.memory_space<vmem>>, vector<1x256xf32>
    %4 = vector.broadcast %3 : vector<1x256xf32> to vector<128x256xf32>
    %5 = arith.addf %2, %4 : vector<128x256xf32>
    %6 = vector.extract_strided_slice %5 {offsets = [0, 0], sizes = [128, 128], strides = [1, 1]} : vector<128x256xf32> to vector<128x128xf32>
    %7 = arith.truncf %6 : vector<128x128xf32> to vector<128x128xbf16>
    %c0_5 = arith.constant 0 : index
    %c0_6 = arith.constant 0 : index
    %8 = vector.load %arg5[%c0_5, %c0_6] : memref<256x128xbf16, #tpu.memory_space<vmem>>, vector<128x128xbf16>
    tpu.vector_store %arg5[%c0_5, %c0_6], %7 {strides = array<i32>} : memref<256x128xbf16, #tpu.memory_space<vmem>>, vector<128x128xbf16>,
    %9 = vector.extract_strided_slice %5 {offsets = [0, 128], sizes = [128, 128], strides = [1, 1]} : vector<128x256xf32> to vector<128x128xf32>
    %10 = arith.truncf %9 : vector<128x128xf32> to vector<128x128xbf16>
    %c128 = arith.constant 128 : index
    %c0_7 = arith.constant 0 : index
    %11 = vector.load %arg5[%c128, %c0_7] : memref<256x128xbf16, #tpu.memory_space<vmem>>, vector<128x128xbf16>
    tpu.vector_store %arg5[%c128, %c0_7], %10 {strides = array<i32>} : memref<256x128xbf16, #tpu.memory_space<vmem>>, vector<128x128xbf16>,
    %c0_8 = arith.constant 0 : index
    %c0_9 = arith.constant 0 : index
    %12 = vector.load %arg4[%c0_8, %c0_9] : memref<32x2xf32, #tpu.memory_space<vmem>>, vector<32x2xf32>
    %cst_10 = arith.constant dense<0.000000e+00> : vector<128x2xf32>
    %13 = tpu.matmul %0, %12, %cst_10 {dimension_numbers = #tpu.dot_dimension_numbers<[1], [0], [0], [1], [0, 0, 1, 1], [], []>} : vector<128x32xf32>, vector<32x2xf32>, vector<128x2xf32> -> vector<128x2xf32>
    %c0_11 = arith.constant 0 : index
    %c0_12 = arith.constant 0 : index
    %14 = vector.load %arg6[%c0_11, %c0_12] : memref<128x2xf32, #tpu.memory_space<vmem>>, vector<128x2xf32>
    tpu.vector_store %arg6[%c0_11, %c0_12], %13 {strides = array<i32>} : memref<128x2xf32, #tpu.memory_space<vmem>>, vector<128x2xf32>,
    return
  }
  func.func @transform_0(%arg0: i32) -> (i32, i32) {
    %c0_i32 = arith.constant 0 : i32
    %c0_i32_0 = arith.constant 0 : i32
    return %arg0, %c0_i32 : i32, i32
  }
  func.func @transform_1(%arg0: i32) -> (i32, i32) {
    %c0_i32 = arith.constant 0 : i32
    %c0_i32_0 = arith.constant 0 : i32
    %c0_i32_1 = arith.constant 0 : i32
    return %c0_i32, %c0_i32_0 : i32, i32
  }
  func.func @transform_2(%arg0: i32) -> (i32, i32) {
    %c0_i32 = arith.constant 0 : i32
    %c0_i32_0 = arith.constant 0 : i32
    %c0_i32_1 = arith.constant 0 : i32
    return %c0_i32, %c0_i32_0 : i32, i32
  }
  func.func @transform_3(%arg0: i32) -> (i32, i32) {
    %c0_i32 = arith.constant 0 : i32
    %c0_i32_0 = arith.constant 0 : i32
    %c0_i32_1 = arith.constant 0 : i32
    return %c0_i32, %c0_i32_0 : i32, i32
  }
  func.func @transform_4(%arg0: i32) -> (i32, i32) {
    %c0_i32 = arith.constant 0 : i32
    %c0_i32_0 = arith.constant 0 : i32
    return %arg0, %c0_i32 : i32, i32
  }
  func.func @transform_5(%arg0: i32) -> (i32, i32) {
    %c0_i32 = arith.constant 0 : i32
    %c0_i32_0 = arith.constant 0 : i32
    return %arg0, %c0_i32 : i32, i32
  }
}

</mosaic_0001>

<llo_original>
// kernel: tpu_custom_call.1
$region0: #{tpu_custom_call.1}
  #allocation0 [shape = 'u32[]', space=smem, size = 0x4, offset = 0x4, fixed_abs, tag = 'smem constant byte address 0x4 - core index']
  #allocation1 [shape = 'u32[144,128]{1,0:T(1,128)}', space=vmem, size = 0x12000, scoped, tag = 'internal scratch']
  %s0 = inlined_call_operand.vmem [shape: f32[256,32], index: 0, kind: input, shape index: {}]
  %s1 = inlined_call_operand.vmem [shape: f32[32,256], index: 1, kind: input, shape index: {}]
  %s2 = inlined_call_operand.vmem [shape: f32[1,256], index: 2, kind: input, shape index: {}]
  %s3 = inlined_call_operand.vmem [shape: f32[32,2], index: 3, kind: input, shape index: {}]
  %s4 = inlined_call_operand.hbm [shape: bf16[512,128], index: 4, kind: output, shape index: {0}]
  %s5 = inlined_call_operand.vmem [shape: f32[256,2], index: 5, kind: output, shape index: {1}]
  %6 = xla_tuple %s4, %s5
  %s7 = sld [smem:[#allocation0]]
  $region57: #{tpu_custom_call.1} parent=0
    _
  %s9 = ssub.s32 1, %s7
  %s10 = scalar_select 0, %s9, %s7
  $region1: #{tpu_custom_call.1} parent=0
    #allocation2 [shape = 'u8[131072]{0}', space=vmem, size = 0x20000, scoped, tag = 'output window, operand 0']
    #allocation3 [shape = 's32[2]{0}', space=sflag, size = 0x8, scoped, tag = 'scoped memory for tpu_custom_call.1']
    %11 = vsyncpa [#allocation3], 0
    %s12 = scalar_lea.sflag [#allocation3], 1
    %13 = vsyncpa %s12, 0
    loop: start=0, step=1, limit=4
    $region2: #{tpu_custom_call.1} parent=1 // loop_pre_header
      _
    $region3: #{tpu_custom_call.1} parent=1 // loop_header
      %s15 = sphi 0, %s19
      %p16 = scmp.ge.s32.totalorder %s15, 4
      %s25 = sphi 0, %s27
      %s28 = sphi 0, %s25
      %s29 = sphi 0, %s28
      %s45 = sphi 0, %s29
      %s49 = sphi 0, %s49
      %s51 = sphi 0, %s49
      %s52 = sphi 0, %s51
      %s66 = sphi 0, %s52
      %s70 = sphi 0, %s70
      %s72 = sphi 0, %s70
      %s73 = sphi 0, %s72
      %s87 = sphi 0, %s73
      %s91 = sphi 0, %s91
      %s93 = sphi 0, %s91
      %s94 = sphi 0, %s93
      %s108 = sphi 0, %s94
      %s114 = sphi 0, %s116
      %s117 = sphi 0, %s114
      %s118 = sphi 0, %s117
      %s134 = sphi 0, %s118
      %s140 = sphi 0, %s142
      %s143 = sphi 0, %s140
      %s144 = sphi 0, %s143
      %s160 = sphi 0, %s144
    $region4: #{tpu_custom_call.1} parent=1 // loop_header_branch
      %18 = sbr.rel (%p16) target = $region8
    $region5: #{tpu_custom_call.1} parent=1 // loop_body
      %s20 = ssub.s32 %s15, 1
      %s21 = ssub.s32 %s15, 2
      %s22 = sadd.s32 %s15, 1
      %s23 = ssub.s32 %s15, %s22
      %p24 = scmp.eq.s32.totalorder %s23, 0
      %s26 = sadd.s32 %s25, 1
      %s27 = scalar_select %p24, %s25, %s26
      %p30 = pneg %p24
      %p31 = scmp.eq.s32.totalorder %s15, 1
      %p32 = por %p30, %p31
      %p33 = scmp.ne.s32.totalorder %s25, %s28
      %p34 = scmp.eq.s32.totalorder %s15, 0
      %p35 = por %p33, %p34
      %p36 = scmp.ne.s32.totalorder %s25, %s28
      %p37 = scmp.eq.s32.totalorder %s20, 1
      %p38 = por %p36, %p37
      %p39 = scmp.ne.s32.totalorder %s28, %s29
      %p40 = scmp.eq.s32.totalorder %s20, 0
      %p41 = por %p39, %p40
      %p42 = scmp.ne.s32.totalorder %s28, %s29
      %p43 = scmp.eq.s32.totalorder %s21, 1
      %p44 = por %p42, %p43
      %p46 = scmp.ne.s32.totalorder %s29, %s45
      %p47 = scmp.eq.s32.totalorder %s21, 0
      %p48 = por %p46, %p47
      %s50 = sadd.s32 %s49, 1
      %p53 = scmp.eq.s32.totalorder %s15, 1
      %p54 = scmp.ne.s32.totalorder %s49, %s51
      %p55 = scmp.eq.s32.totalorder %s15, 0
      %p56 = por %p54, %p55
      %p57 = scmp.ne.s32.totalorder %s49, %s51
      %p58 = scmp.eq.s32.totalorder %s20, 1
      %p59 = por %p57, %p58
      %p60 = scmp.ne.s32.totalorder %s51, %s52
      %p61 = scmp.eq.s32.totalorder %s20, 0
      %p62 = por %p60, %p61
      %p63 = scmp.ne.s32.totalorder %s51, %s52
      %p64 = scmp.eq.s32.totalorder %s21, 1
      %p65 = por %p63, %p64
      %p67 = scmp.ne.s32.totalorder %s52, %s66
      %p68 = scmp.eq.s32.totalorder %s21, 0
      %p69 = por %p67, %p68
      %s71 = sadd.s32 %s70, 1
      %p74 = scmp.eq.s32.totalorder %s15, 1
      %p75 = scmp.ne.s32.totalorder %s70, %s72
      %p76 = scmp.eq.s32.totalorder %s15, 0
      %p77 = por %p75, %p76
      %p78 = scmp.ne.s32.totalorder %s70, %s72
      %p79 = scmp.eq.s32.totalorder %s20, 1
      %p80 = por %p78, %p79
      %p81 = scmp.ne.s32.totalorder %s72, %s73
      %p82 = scmp.eq.s32.totalorder %s20, 0
      %p83 = por %p81, %p82
      %p84 = scmp.ne.s32.totalorder %s72, %s73
      %p85 = scmp.eq.s32.totalorder %s21, 1
      %p86 = por %p84, %p85
      %p88 = scmp.ne.s32.totalorder %s73, %s87
      %p89 = scmp.eq.s32.totalorder %s21, 0
      %p90 = por %p88, %p89
      %s92 = sadd.s32 %s91, 1
      %p95 = scmp.eq.s32.totalorder %s15, 1
      %p96 = scmp.ne.s32.totalorder %s91, %s93
      %p97 = scmp.eq.s32.totalorder %s15, 0
      %p98 = por %p96, %p97
      %p99 = scmp.ne.s32.totalorder %s91, %s93
      %p100 = scmp.eq.s32.totalorder %s20, 1
      %p101 = por %p99, %p100
      %p102 = scmp.ne.s32.totalorder %s93, %s94
      %p103 = scmp.eq.s32.totalorder %s20, 0
      %p104 = por %p102, %p103
      %p105 = scmp.ne.s32.totalorder %s93, %s94
      %p106 = scmp.eq.s32.totalorder %s21, 1
      %p107 = por %p105, %p106
      %p109 = scmp.ne.s32.totalorder %s94, %s108
      %p110 = scmp.eq.s32.totalorder %s21, 0
      %p111 = por %p109, %p110
      %s112 = ssub.s32 %s15, %s22
      %p113 = scmp.eq.s32.totalorder %s112, 0
      %s115 = sadd.s32 %s114, 1
      %s116 = scalar_select %p113, %s114, %s115
      %p119 = pneg %p113
      %p120 = scmp.eq.s32.totalorder %s15, 1
      %p121 = por %p119, %p120
      %p122 = scmp.ne.s32.totalorder %s114, %s117
      %p123 = scmp.eq.s32.totalorder %s15, 0
      %p124 = por %p122, %p123
      %p125 = scmp.ne.s32.totalorder %s114, %s117
      %p126 = scmp.eq.s32.totalorder %s20, 1
      %p127 = por %p125, %p126
      %p128 = scmp.ne.s32.totalorder %s117, %s118
      %p129 = scmp.eq.s32.totalorder %s20, 0
      %p130 = por %p128, %p129
      %p131 = scmp.ne.s32.totalorder %s117, %s118
      %p132 = scmp.eq.s32.totalorder %s21, 1
      %p133 = por %p131, %p132
      %p135 = scmp.ne.s32.totalorder %s118, %s134
      %p136 = scmp.eq.s32.totalorder %s21, 0
      %p137 = por %p135, %p136
      %s138 = ssub.s32 %s15, %s22
      %p139 = scmp.eq.s32.totalorder %s138, 0
      %s141 = sadd.s32 %s140, 1
      %s142 = scalar_select %p139, %s140, %s141
      %p145 = pneg %p139
      %p146 = scmp.eq.s32.totalorder %s15, 1
      %p147 = por %p145, %p146
      %p148 = scmp.ne.s32.totalorder %s140, %s143
      %p149 = scmp.eq.s32.totalorder %s15, 0
      %p150 = por %p148, %p149
      %p151 = scmp.ne.s32.totalorder %s140, %s143
      %p152 = scmp.eq.s32.totalorder %s20, 1
      %p153 = por %p151, %p152
      %p154 = scmp.ne.s32.totalorder %s143, %s144
      %p155 = scmp.eq.s32.totalorder %s20, 0
      %p156 = por %p154, %p155
      %p157 = scmp.ne.s32.totalorder %s143, %s144
      %p158 = scmp.eq.s32.totalorder %s21, 1
      %p159 = por %p157, %p158
      %p161 = scmp.ne.s32.totalorder %s144, %s160
      %p162 = scmp.eq.s32.totalorder %s21, 0
      %p163 = por %p161, %p162
      %p164 = scmp.le.s32.totalorder 1, %s15
      %p165 = scmp.lt.s32.totalorder %s15, 3
      %p166 = pnand %p164, %p165
      %p167 = pneg %p166
      // Predicated region
      $region9: #{tpu_custom_call.1} parent=5 // pred_check
        _
      $region10: #{tpu_custom_call.1} parent=5 // pred_check_branch
        %169 = sbr.rel (%p166) target = $region12
      $region11: #{tpu_custom_call.1} parent=5 // pred_region
        %s170 = ssub.s32 %s15, 1
        // Predicated region
        $region13: #{tpu_custom_call.1} parent=11 // pred_check
          %p171 = pneg %p62
        $region14: #{tpu_custom_call.1} parent=11 // pred_check_branch
          %173 = sbr.rel (%p171) target = $region16
        $region15: #{tpu_custom_call.1} parent=11 // pred_region
          _
        $region16: #{tpu_custom_call.1} parent=11 // pred_fallthru
          _
        // Predicated region
        $region17: #{tpu_custom_call.1} parent=11 // pred_check
          %p174 = pneg %p83
        $region18: #{tpu_custom_call.1} parent=11 // pred_check_branch
          %176 = sbr.rel (%p174) target = $region20
        $region19: #{tpu_custom_call.1} parent=11 // pred_region
          _
        $region20: #{tpu_custom_call.1} parent=11 // pred_fallthru
          _
        // Predicated region
        $region21: #{tpu_custom_call.1} parent=11 // pred_check
          %p177 = pneg %p104
        $region22: #{tpu_custom_call.1} parent=11 // pred_check_branch
          %179 = sbr.rel (%p177) target = $region24
        $region23: #{tpu_custom_call.1} parent=11 // pred_region
          _
        $region24: #{tpu_custom_call.1} parent=11 // pred_fallthru
          _
      $region12: #{tpu_custom_call.1} parent=5 // pred_fallthru
        _
      %p180 = scmp.lt.s32.totalorder %s15, 2
      // Predicated region
      $region25: #{tpu_custom_call.1} parent=5 // pred_check
        %p181 = pneg %p180
      $region26: #{tpu_custom_call.1} parent=5 // pred_check_branch
        %183 = sbr.rel (%p181) target = $region28
      $region27: #{tpu_custom_call.1} parent=5 // pred_region
        // Predicated region
        $region29: #{tpu_custom_call.1} parent=27 // pred_check
          %p184 = pneg %p35
        $region30: #{tpu_custom_call.1} parent=27 // pred_check_branch
          %186 = sbr.rel (%p184) target = $region32
        $region31: #{tpu_custom_call.1} parent=27 // pred_region
          %s187 = smul.u32 16, %s15
          %p188 = scmp.lt.s32.totalorder %s187, 31
          %s189 = scalar_select %p188, %s187, 31
          %s190 = smul.addr %s189, 8
          %s191 = scalar_lea.vmem %s0, %s190
          %s192 = smul.u32 16, %s15
        $region32: #{tpu_custom_call.1} parent=27 // pred_fallthru
          _
      $region28: #{tpu_custom_call.1} parent=5 // pred_fallthru
        _
      %p193 = scmp.le.s32.totalorder 1, %s15
      %p194 = scmp.lt.s32.totalorder %s15, 3
      %p195 = pnand %p193, %p194
      %p196 = pneg %p195
      // Predicated region
      $region33: #{tpu_custom_call.1} parent=5 // pred_check
        _
      $region34: #{tpu_custom_call.1} parent=5 // pred_check_branch
        %198 = sbr.rel (%p195) target = $region36
      $region35: #{tpu_custom_call.1} parent=5 // pred_region
        %s199 = ssub.s32 %s15, 1
        %s200 = smul.u32 16, %s20
        %p201 = scmp.lt.s32.totalorder %s200, 31
        %s202 = scalar_select %p201, %s200, 31
        %s203 = smul.addr %s202, 8
        %s204 = scalar_lea.vmem %s0, %s203
        %p205 = pneg %p41
        %p206 = pneg %p38
        %p207 = pneg %p62
        %p208 = pneg %p59
        %p209 = pneg %p83
        %p210 = pneg %p80
        %p211 = pneg %p104
        %p212 = pneg %p101
        %p213 = pneg %p130
        %p214 = pneg %p127
        %s215 = sand.u32 %s117, 1
        %s216 = scalar_lea.sflag [#allocation3], %s215
        %s217 = sand.u32 %s117, 1
        %s218 = smul.addr %s217, 128
        %s219 = scalar_lea.vmem [#allocation2], %s218
        %p220 = pneg %p156
        %p221 = pneg %p153
        %s222 = smul.u32 16, %s20
        %p223 = scmp.lt.s32.totalorder %s222, 31
        %s224 = scalar_select %p223, %s222, 31
        %s225 = smul.addr %s224, 8
        %s226 = scalar_lea.vmem %s5, %s225
        %s227 = smul.u32 16, %s20
        %p228 = scmp.lt.s32.totalorder %s227, 31
        %s229 = scalar_select %p228, %s227, 31
        %s230 = smul.addr %s229, 8
        %s231 = scalar_lea.vmem %s0, %s230
        %s232 = smul.u32 16, %s20
        %s233 = smul.u32 32, %s20
        %s234 = smul.u32 16, %s20
        %p235 = scmp.lt.s32.totalorder %s234, 31
        %s236 = scalar_select %p235, %s234, 31
        %s237 = smul.addr %s236, 8
        %s238 = scalar_lea.vmem %s5, %s237
        %s239 = smul.u32 16, %s20
        %v240 = vld [vmem:[%s231] sm:$0xff]
        %v241 = vld [vmem:[%s231 + $0x8] sm:$0xff]
        %v242 = vld [vmem:[%s231 + $0x10] sm:$0xff]
        %v243 = vld [vmem:[%s231 + $0x18] sm:$0xff]
        %v244 = vld [vmem:[%s231 + $0x20] sm:$0xff]
        %v245 = vld [vmem:[%s231 + $0x28] sm:$0xff]
        %v246 = vld [vmem:[%s231 + $0x30] sm:$0xff]
        %v247 = vld [vmem:[%s231 + $0x38] sm:$0xff]
        %v248 = vld [vmem:[%s231 + $0x40] sm:$0xff]
        %v249 = vld [vmem:[%s231 + $0x48] sm:$0xff]
        %v250 = vld [vmem:[%s231 + $0x50] sm:$0xff]
        %v251 = vld [vmem:[%s231 + $0x58] sm:$0xff]
        %v252 = vld [vmem:[%s231 + $0x60] sm:$0xff]
        %v253 = vld [vmem:[%s231 + $0x68] sm:$0xff]
        %v254 = vld [vmem:[%s231 + $0x70] sm:$0xff]
        %v255 = vld [vmem:[%s231 + $0x78] sm:$0xff]
        %v256 = vld [vmem:[%s1] sm:$0xff]
        %v257 = vld [vmem:[%s1 + $0x8] sm:$0xff]
        %v258 = vld [vmem:[%s1 + $0x10] sm:$0xff]
        %v259 = vld [vmem:[%s1 + $0x18] sm:$0xff]
        %v260 = vld [vmem:[%s1 + $0x20] sm:$0xff]
        %v261 = vld [vmem:[%s1 + $0x28] sm:$0xff]
        %v262 = vld [vmem:[%s1 + $0x30] sm:$0xff]
        %v263 = vld [vmem:[%s1 + $0x38] sm:$0xff]
        %v264 = vld [vmem:[%s2] sm:$0x3]
        %v266 = vlaneseq
        %v267 = vshrl.u32 %v266, 7
        %v268 = vsub.s32 0, %v267
        %v269 = vrot.slane %v264, %v268
        %v270 = vlaneseq
        %v271 = vshrl.u32 %v270, 7
        %v272 = vsub.s32 1, %v271
        %v273 = vrot.slane %v264, %v272
        %vm276 = vcmask 261120
        %v278 = vsel %vm276, %v240, 0
        %v281 = vsel %vm276, %v241, 0
        %v284 = vsel %vm276, %v242, 0
        %v287 = vsel %vm276, %v243, 0
        %v290 = vsel %vm276, %v244, 0
        %v293 = vsel %vm276, %v245, 0
        %v296 = vsel %vm276, %v246, 0
        %v299 = vsel %vm276, %v247, 0
        %v302 = vsel %vm276, %v248, 0
        %v305 = vsel %vm276, %v249, 0
        %v308 = vsel %vm276, %v250, 0
        %v311 = vsel %vm276, %v251, 0
        %v314 = vsel %vm276, %v252, 0
        %v317 = vsel %vm276, %v253, 0
        %v320 = vsel %vm276, %v254, 0
        %v323 = vsel %vm276, %v255, 0
        %325 = vmatprep.subr.mxu0 0.0
        %326 = vmatpush1.msra.mxu0 0.0
        %327 = vmatprep.subr.mxu0 0.0
        %328 = vmatpush1.msra.mxu0 0.0
        %329 = vmatprep.subr.mxu0 0.0
        %330 = vmatpush1.msra.mxu0 0.0
        %331 = vmatprep.subr.mxu0 0.0
        %332 = vmatpush1.msra.mxu0 0.0
        %333 = vmatprep.subr.mxu0 0.0
        %334 = vmatpush1.msra.mxu0 0.0
        %335 = vmatprep.subr.mxu0 0.0
        %336 = vmatpush1.msra.mxu0 0.0
        %337 = vmatprep.subr.mxu0 0.0
        %338 = vmatpush1.msra.mxu0 0.0
        %339 = vmatprep.subr.mxu0 0.0
        %340 = vmatpush1.msra.mxu0 0.0
        %341 = vmatprep.subr.mxu0 0.0
        %342 = vmatpush1.msra.mxu0 0.0
        %343 = vmatprep.subr.mxu0 0.0
        %344 = vmatpush1.msra.mxu0 0.0
        %345 = vmatprep.subr.mxu0 0.0
        %346 = vmatpush1.msra.mxu0 0.0
        %347 = vmatprep.subr.mxu0 0.0
        %348 = vmatpush1.msra.mxu0 0.0
        %349 = vmatprep.subr.mxu0 %v263
        %350 = vmatpush1.msra.mxu0 %v262
        %351 = vmatprep.subr.mxu0 %v261
        %352 = vmatpush1.msra.mxu0 %v260
        %353 = vmatprep.subr.mxu0 %v259
        %354 = vmatpush1.msra.mxu0 %v258
        %355 = vmatprep.subr.mxu0 %v257
        %356 = vmatpush1.msra.mxu0 %v256
        %357 = vmatprep.subr.mxu0 0.0
        %358 = vmatpush2.msra.mxu0 0.0
        %359 = vmatprep.subr.mxu0 0.0
        %360 = vmatpush2.msra.mxu0 0.0
        %361 = vmatprep.subr.mxu0 0.0
        %362 = vmatpush2.msra.mxu0 0.0
        %363 = vmatprep.subr.mxu0 0.0
        %364 = vmatpush2.msra.mxu0 0.0
        %365 = vmatprep.subr.mxu0 0.0
        %366 = vmatpush2.msra.mxu0 0.0
        %367 = vmatprep.subr.mxu0 0.0
        %368 = vmatpush2.msra.mxu0 0.0
        %369 = vmatprep.subr.mxu0 0.0
        %370 = vmatpush2.msra.mxu0 0.0
        %371 = vmatprep.subr.mxu0 0.0
        %372 = vmatpush2.msra.mxu0 0.0
        %373 = vmatprep.subr.mxu0 0.0
        %374 = vmatpush2.msra.mxu0 0.0
        %375 = vmatprep.subr.mxu0 0.0
        %376 = vmatpush2.msra.mxu0 0.0
        %377 = vmatprep.subr.mxu0 0.0
        %378 = vmatpush2.msra.mxu0 0.0
        %379 = vmatprep.subr.mxu0 0.0
        %380 = vmatpush2.msra.mxu0 0.0
        %381 = vmatprep.subr.mxu0 0.0
        %382 = vmatpush2.msra.mxu0 0.0
        %383 = vmatprep.subr.mxu0 0.0
        %384 = vmatpush2.msra.mxu0 0.0
        %385 = vmatprep.subr.mxu0 0.0
        %386 = vmatpush2.msra.mxu0 0.0
        %387 = vmatprep.subr.mxu0 0.0
        %388 = vmatpush2.msra.mxu0 0.0
        %389 = vmatprep.mubr.f32.mxu0 0.0
        %390 = vmatmul.mubr.f32.gmra.mxu0 %v278
        %v391 = vpop.f32.mrf.mxu0
        %v392 = vadd.f32 %v269, %v391
        %v393 = vpop.f32.mrf.mxu0
        %v394 = vadd.f32 %v273, %v393
        %395 = vmatprep.mubr.f32.mxu0 0.0
        %396 = vmatmul.mubr.f32.gmra.mxu0 %v281
        %v397 = vpop.f32.mrf.mxu0
        %v398 = vadd.f32 %v269, %v397
        %v399 = vpop.f32.mrf.mxu0
        %v400 = vadd.f32 %v273, %v399
        %401 = vmatprep.mubr.f32.mxu0 0.0
        %402 = vmatmul.mubr.f32.gmra.mxu0 %v284
        %v403 = vpop.f32.mrf.mxu0
        %v404 = vadd.f32 %v269, %v403
        %v405 = vpop.f32.mrf.mxu0
        %v406 = vadd.f32 %v273, %v405
        %407 = vmatprep.mubr.f32.mxu0 0.0
        %408 = vmatmul.mubr.f32.gmra.mxu0 %v287
        %v409 = vpop.f32.mrf.mxu0
        %v410 = vadd.f32 %v269, %v409
        %v411 = vpop.f32.mrf.mxu0
        %v412 = vadd.f32 %v273, %v411
        %413 = vmatprep.mubr.f32.mxu0 0.0
        %414 = vmatmul.mubr.f32.gmra.mxu0 %v290
        %v415 = vpop.f32.mrf.mxu0
        %v416 = vadd.f32 %v269, %v415
        %v417 = vpop.f32.mrf.mxu0
        %v418 = vadd.f32 %v273, %v417
        %419 = vmatprep.mubr.f32.mxu0 0.0
        %420 = vmatmul.mubr.f32.gmra.mxu0 %v293
        %v421 = vpop.f32.mrf.mxu0
        %v422 = vadd.f32 %v269, %v421
        %v423 = vpop.f32.mrf.mxu0
        %v424 = vadd.f32 %v273, %v423
        %425 = vmatprep.mubr.f32.mxu0 0.0
        %426 = vmatmul.mubr.f32.gmra.mxu0 %v296
        %v427 = vpop.f32.mrf.mxu0
        %v428 = vadd.f32 %v269, %v427
        %v429 = vpop.f32.mrf.mxu0
        %v430 = vadd.f32 %v273, %v429
        %431 = vmatprep.mubr.f32.mxu0 0.0
        %432 = vmatmul.mubr.f32.gmra.mxu0 %v299
        %v433 = vpop.f32.mrf.mxu0
        %v434 = vadd.f32 %v269, %v433
        %v435 = vpop.f32.mrf.mxu0
        %v436 = vadd.f32 %v273, %v435
        %437 = vmatprep.mubr.f32.mxu0 0.0
        %438 = vmatmul.mubr.f32.gmra.mxu0 %v302
        %v439 = vpop.f32.mrf.mxu0
        %v440 = vadd.f32 %v269, %v439
        %v441 = vpop.f32.mrf.mxu0
        %v442 = vadd.f32 %v273, %v441
        %443 = vmatprep.mubr.f32.mxu0 0.0
        %444 = vmatmul.mubr.f32.gmra.mxu0 %v305
        %v445 = vpop.f32.mrf.mxu0
        %v446 = vadd.f32 %v269, %v445
        %v447 = vpop.f32.mrf.mxu0
        %v448 = vadd.f32 %v273, %v447
        %449 = vmatprep.mubr.f32.mxu0 0.0
        %450 = vmatmul.mubr.f32.gmra.mxu0 %v308
        %v451 = vpop.f32.mrf.mxu0
        %v452 = vadd.f32 %v269, %v451
        %v453 = vpop.f32.mrf.mxu0
        %v454 = vadd.f32 %v273, %v453
        %455 = vmatprep.mubr.f32.mxu0 0.0
        %456 = vmatmul.mubr.f32.gmra.mxu0 %v311
        %v457 = vpop.f32.mrf.mxu0
        %v458 = vadd.f32 %v269, %v457
        %v459 = vpop.f32.mrf.mxu0
        %v460 = vadd.f32 %v273, %v459
        %461 = vmatprep.mubr.f32.mxu0 0.0
        %462 = vmatmul.mubr.f32.gmra.mxu0 %v314
        %v463 = vpop.f32.mrf.mxu0
        %v464 = vadd.f32 %v269, %v463
        %v465 = vpop.f32.mrf.mxu0
        %v466 = vadd.f32 %v273, %v465
        %467 = vmatprep.mubr.f32.mxu0 0.0
        %468 = vmatmul.mubr.f32.gmra.mxu0 %v317
        %v469 = vpop.f32.mrf.mxu0
        %v470 = vadd.f32 %v269, %v469
        %v471 = vpop.f32.mrf.mxu0
        %v472 = vadd.f32 %v273, %v471
        %473 = vmatprep.mubr.f32.mxu0 0.0
        %474 = vmatmul.mubr.f32.gmra.mxu0 %v320
        %v475 = vpop.f32.mrf.mxu0
        %v476 = vadd.f32 %v269, %v475
        %v477 = vpop.f32.mrf.mxu0
        %v478 = vadd.f32 %v273, %v477
        %479 = vmatprep.mubr.f32.mxu0 0.0
        %480 = vmatmul.mubr.f32.gmra.mxu0 %v323
        %v481 = vpop.f32.mrf.mxu0
        %v482 = vadd.f32 %v269, %v481
        %v483 = vpop.f32.mrf.mxu0
        %v484 = vadd.f32 %v273, %v483
        %485 = vdwg.mxu0
        %v486 = vpack.c.bf16 %v398, %v392
        %v487 = vpack.c.bf16 %v410, %v404
        %v488 = vpack.c.bf16 %v422, %v416
        %v489 = vpack.c.bf16 %v434, %v428
        %v490 = vpack.c.bf16 %v446, %v440
        %v491 = vpack.c.bf16 %v458, %v452
        %v492 = vpack.c.bf16 %v470, %v464
        %v493 = vpack.c.bf16 %v482, %v476
        %v502 = vunpack.c.l.b16 %v486
        %v503 = vunpack.c.h.b16 %v486
        %v504 = vunpack.c.l.b16 %v487
        %v505 = vunpack.c.h.b16 %v487
        %v506 = vunpack.c.l.b16 %v488
        %v507 = vunpack.c.h.b16 %v488
        %v508 = vunpack.c.l.b16 %v489
        %v509 = vunpack.c.h.b16 %v489
        %v510 = vunpack.c.l.b16 %v490
        %v511 = vunpack.c.h.b16 %v490
        %v512 = vunpack.c.l.b16 %v491
        %v513 = vunpack.c.h.b16 %v491
        %v514 = vunpack.c.l.b16 %v492
        %v515 = vunpack.c.h.b16 %v492
        %v516 = vunpack.c.l.b16 %v493
        %v517 = vunpack.c.h.b16 %v493
        %v518 = vpack.c.b16 %v502, %v502
        %v519 = vpack.c.b16 %v503, %v503
        %v520 = vpack.c.b16 %v504, %v504
        %v521 = vpack.c.b16 %v505, %v505
        %v522 = vpack.c.b16 %v506, %v506
        %v523 = vpack.c.b16 %v507, %v507
        %v524 = vpack.c.b16 %v508, %v508
        %v525 = vpack.c.b16 %v509, %v509
        %v526 = vpack.c.b16 %v510, %v510
        %v527 = vpack.c.b16 %v511, %v511
        %v528 = vpack.c.b16 %v512, %v512
        %v529 = vpack.c.b16 %v513, %v513
        %v530 = vpack.c.b16 %v514, %v514
        %v531 = vpack.c.b16 %v515, %v515
        %v532 = vpack.c.b16 %v516, %v516
        %v533 = vpack.c.b16 %v517, %v517
        %550 = vst [vmem:[%s219] sm:$0xf] %v518
        %551 = vst [vmem:[%s219 + $0x4] sm:$0xf] %v519
        %552 = vst [vmem:[%s219 + $0x8] sm:$0xf] %v520
        %553 = vst [vmem:[%s219 + $0xc] sm:$0xf] %v521
        %554 = vst [vmem:[%s219 + $0x10] sm:$0xf] %v522
        %555 = vst [vmem:[%s219 + $0x14] sm:$0xf] %v523
        %556 = vst [vmem:[%s219 + $0x18] sm:$0xf] %v524
        %557 = vst [vmem:[%s219 + $0x1c] sm:$0xf] %v525
        %558 = vst [vmem:[%s219 + $0x20] sm:$0xf] %v526
        %559 = vst [vmem:[%s219 + $0x24] sm:$0xf] %v527
        %560 = vst [vmem:[%s219 + $0x28] sm:$0xf] %v528
        %561 = vst [vmem:[%s219 + $0x2c] sm:$0xf] %v529
        %562 = vst [vmem:[%s219 + $0x30] sm:$0xf] %v530
        %563 = vst [vmem:[%s219 + $0x34] sm:$0xf] %v531
        %564 = vst [vmem:[%s219 + $0x38] sm:$0xf] %v532
        %565 = vst [vmem:[%s219 + $0x3c] sm:$0xf] %v533
        %v566 = vpack.c.bf16 %v400, %v394
        %v567 = vpack.c.bf16 %v412, %v406
        %v568 = vpack.c.bf16 %v424, %v418
        %v569 = vpack.c.bf16 %v436, %v430
        %v570 = vpack.c.bf16 %v448, %v442
        %v571 = vpack.c.bf16 %v460, %v454
        %v572 = vpack.c.bf16 %v472, %v466
        %v573 = vpack.c.bf16 %v484, %v478
        %v582 = vunpack.c.l.b16 %v566
        %v583 = vunpack.c.h.b16 %v566
        %v584 = vunpack.c.l.b16 %v567
        %v585 = vunpack.c.h.b16 %v567
        %v586 = vunpack.c.l.b16 %v568
        %v587 = vunpack.c.h.b16 %v568
        %v588 = vunpack.c.l.b16 %v569
        %v589 = vunpack.c.h.b16 %v569
        %v590 = vunpack.c.l.b16 %v570
        %v591 = vunpack.c.h.b16 %v570
        %v592 = vunpack.c.l.b16 %v571
        %v593 = vunpack.c.h.b16 %v571
        %v594 = vunpack.c.l.b16 %v572
        %v595 = vunpack.c.h.b16 %v572
        %v596 = vunpack.c.l.b16 %v573
        %v597 = vunpack.c.h.b16 %v573
        %v598 = vpack.c.b16 %v582, %v582
        %v599 = vpack.c.b16 %v583, %v583
        %v600 = vpack.c.b16 %v584, %v584
        %v601 = vpack.c.b16 %v585, %v585
        %v602 = vpack.c.b16 %v586, %v586
        %v603 = vpack.c.b16 %v587, %v587
        %v604 = vpack.c.b16 %v588, %v588
        %v605 = vpack.c.b16 %v589, %v589
        %v606 = vpack.c.b16 %v590, %v590
        %v607 = vpack.c.b16 %v591, %v591
        %v608 = vpack.c.b16 %v592, %v592
        %v609 = vpack.c.b16 %v593, %v593
        %v610 = vpack.c.b16 %v594, %v594
        %v611 = vpack.c.b16 %v595, %v595
        %v612 = vpack.c.b16 %v596, %v596
        %v613 = vpack.c.b16 %v597, %v597
        %630 = vst [vmem:[%s219 + $0x40] sm:$0xf] %v598
        %631 = vst [vmem:[%s219 + $0x44] sm:$0xf] %v599
        %632 = vst [vmem:[%s219 + $0x48] sm:$0xf] %v600
        %633 = vst [vmem:[%s219 + $0x4c] sm:$0xf] %v601
        %634 = vst [vmem:[%s219 + $0x50] sm:$0xf] %v602
        %635 = vst [vmem:[%s219 + $0x54] sm:$0xf] %v603
        %636 = vst [vmem:[%s219 + $0x58] sm:$0xf] %v604
        %637 = vst [vmem:[%s219 + $0x5c] sm:$0xf] %v605
        %638 = vst [vmem:[%s219 + $0x60] sm:$0xf] %v606
        %639 = vst [vmem:[%s219 + $0x64] sm:$0xf] %v607
        %640 = vst [vmem:[%s219 + $0x68] sm:$0xf] %v608
        %641 = vst [vmem:[%s219 + $0x6c] sm:$0xf] %v609
        %642 = vst [vmem:[%s219 + $0x70] sm:$0xf] %v610
        %643 = vst [vmem:[%s219 + $0x74] sm:$0xf] %v611
        %644 = vst [vmem:[%s219 + $0x78] sm:$0xf] %v612
        %645 = vst [vmem:[%s219 + $0x7c] sm:$0xf] %v613
        %v646 = vld [vmem:[%s3] sm:$0xff]
        %v647 = vld [vmem:[%s3 + $0x8] sm:$0xff]
        %v648 = vld [vmem:[%s3 + $0x10] sm:$0xff]
        %v649 = vld [vmem:[%s3 + $0x18] sm:$0xff]
        %650 = vmatprep.subr.mxu0 0.0
        %651 = vmatpush1.msra.mxu0 0.0
        %652 = vmatprep.subr.mxu0 0.0
        %653 = vmatpush1.msra.mxu0 0.0
        %654 = vmatprep.subr.mxu0 0.0
        %655 = vmatpush1.msra.mxu0 0.0
        %656 = vmatprep.subr.mxu0 0.0
        %657 = vmatpush1.msra.mxu0 0.0
        %658 = vmatprep.subr.mxu0 0.0
        %659 = vmatpush1.msra.mxu0 0.0
        %660 = vmatprep.subr.mxu0 0.0
        %661 = vmatpush1.msra.mxu0 0.0
        %662 = vmatprep.subr.mxu0 0.0
        %663 = vmatpush1.msra.mxu0 0.0
        %664 = vmatprep.subr.mxu0 0.0
        %665 = vmatpush1.msra.mxu0 0.0
        %666 = vmatprep.subr.mxu0 0.0
        %667 = vmatpush1.msra.mxu0 0.0
        %668 = vmatprep.subr.mxu0 0.0
        %669 = vmatpush1.msra.mxu0 0.0
        %670 = vmatprep.subr.mxu0 0.0
        %671 = vmatpush1.msra.mxu0 0.0
        %672 = vmatprep.subr.mxu0 0.0
        %673 = vmatpush1.msra.mxu0 0.0
        %674 = vmatprep.subr.mxu0 0.0
        %675 = vmatpush1.msra.mxu0 %v649
        %676 = vmatprep.subr.mxu0 0.0
        %677 = vmatpush1.msra.mxu0 %v648
        %678 = vmatprep.subr.mxu0 0.0
        %679 = vmatpush1.msra.mxu0 %v647
        %680 = vmatprep.subr.mxu0 0.0
        %681 = vmatpush1.msra.mxu0 %v646
        %682 = vmatprep.subr.mxu0 0.0
        %683 = vmatpush2.msra.mxu0 0.0
        %684 = vmatprep.subr.mxu0 0.0
        %685 = vmatpush2.msra.mxu0 0.0
        %686 = vmatprep.subr.mxu0 0.0
        %687 = vmatpush2.msra.mxu0 0.0
        %688 = vmatprep.subr.mxu0 0.0
        %689 = vmatpush2.msra.mxu0 0.0
        %690 = vmatprep.subr.mxu0 0.0
        %691 = vmatpush2.msra.mxu0 0.0
        %692 = vmatprep.subr.mxu0 0.0
        %693 = vmatpush2.msra.mxu0 0.0
        %694 = vmatprep.subr.mxu0 0.0
        %695 = vmatpush2.msra.mxu0 0.0
        %696 = vmatprep.subr.mxu0 0.0
        %697 = vmatpush2.msra.mxu0 0.0
        %698 = vmatprep.subr.mxu0 0.0
        %699 = vmatpush2.msra.mxu0 0.0
        %700 = vmatprep.subr.mxu0 0.0
        %701 = vmatpush2.msra.mxu0 0.0
        %702 = vmatprep.subr.mxu0 0.0
        %703 = vmatpush2.msra.mxu0 0.0
        %704 = vmatprep.subr.mxu0 0.0
        %705 = vmatpush2.msra.mxu0 0.0
        %706 = vmatprep.subr.mxu0 0.0
        %707 = vmatpush2.msra.mxu0 0.0
        %708 = vmatprep.subr.mxu0 0.0
        %709 = vmatpush2.msra.mxu0 0.0
        %710 = vmatprep.subr.mxu0 0.0
        %711 = vmatpush2.msra.mxu0 0.0
        %712 = vmatprep.subr.mxu0 0.0
        %713 = vmatpush2.msra.mxu0 0.0
        %714 = vmatprep.mubr.f32.mxu0 0.0
        %715 = vmatmul.mubr.f32.gmra.mxu0 %v278
        %v716 = vpop.f32.mrf.mxu0
        %v717 = vadd.f32 0.0, %v716
        %v718 = vpop.f32.mrf.mxu0
        %719 = vmatprep.mubr.f32.mxu0 0.0
        %720 = vmatmul.mubr.f32.gmra.mxu0 %v281
        %v721 = vpop.f32.mrf.mxu0
        %v722 = vadd.f32 0.0, %v721
        %v723 = vpop.f32.mrf.mxu0
        %724 = vmatprep.mubr.f32.mxu0 0.0
        %725 = vmatmul.mubr.f32.gmra.mxu0 %v284
        %v726 = vpop.f32.mrf.mxu0
        %v727 = vadd.f32 0.0, %v726
        %v728 = vpop.f32.mrf.mxu0
        %729 = vmatprep.mubr.f32.mxu0 0.0
        %730 = vmatmul.mubr.f32.gmra.mxu0 %v287
        %v731 = vpop.f32.mrf.mxu0
        %v732 = vadd.f32 0.0, %v731
        %v733 = vpop.f32.mrf.mxu0
        %734 = vmatprep.mubr.f32.mxu0 0.0
        %735 = vmatmul.mubr.f32.gmra.mxu0 %v290
        %v736 = vpop.f32.mrf.mxu0
        %v737 = vadd.f32 0.0, %v736
        %v738 = vpop.f32.mrf.mxu0
        %739 = vmatprep.mubr.f32.mxu0 0.0
        %740 = vmatmul.mubr.f32.gmra.mxu0 %v293
        %v741 = vpop.f32.mrf.mxu0
        %v742 = vadd.f32 0.0, %v741
        %v743 = vpop.f32.mrf.mxu0
        %744 = vmatprep.mubr.f32.mxu0 0.0
        %745 = vmatmul.mubr.f32.gmra.mxu0 %v296
        %v746 = vpop.f32.mrf.mxu0
        %v747 = vadd.f32 0.0, %v746
        %v748 = vpop.f32.mrf.mxu0
        %749 = vmatprep.mubr.f32.mxu0 0.0
        %750 = vmatmul.mubr.f32.gmra.mxu0 %v299
        %v751 = vpop.f32.mrf.mxu0
        %v752 = vadd.f32 0.0, %v751
        %v753 = vpop.f32.mrf.mxu0
        %754 = vmatprep.mubr.f32.mxu0 0.0
        %755 = vmatmul.mubr.f32.gmra.mxu0 %v302
        %v756 = vpop.f32.mrf.mxu0
        %v757 = vadd.f32 0.0, %v756
        %v758 = vpop.f32.mrf.mxu0
        %759 = vmatprep.mubr.f32.mxu0 0.0
        %760 = vmatmul.mubr.f32.gmra.mxu0 %v305
        %v761 = vpop.f32.mrf.mxu0
        %v762 = vadd.f32 0.0, %v761
        %v763 = vpop.f32.mrf.mxu0
        %764 = vmatprep.mubr.f32.mxu0 0.0
        %765 = vmatmul.mubr.f32.gmra.mxu0 %v308
        %v766 = vpop.f32.mrf.mxu0
        %v767 = vadd.f32 0.0, %v766
        %v768 = vpop.f32.mrf.mxu0
        %769 = vmatprep.mubr.f32.mxu0 0.0
        %770 = vmatmul.mubr.f32.gmra.mxu0 %v311
        %v771 = vpop.f32.mrf.mxu0
        %v772 = vadd.f32 0.0, %v771
        %v773 = vpop.f32.mrf.mxu0
        %774 = vmatprep.mubr.f32.mxu0 0.0
        %775 = vmatmul.mubr.f32.gmra.mxu0 %v314
        %v776 = vpop.f32.mrf.mxu0
        %v777 = vadd.f32 0.0, %v776
        %v778 = vpop.f32.mrf.mxu0
        %779 = vmatprep.mubr.f32.mxu0 0.0
        %780 = vmatmul.mubr.f32.gmra.mxu0 %v317
        %v781 = vpop.f32.mrf.mxu0
        %v782 = vadd.f32 0.0, %v781
        %v783 = vpop.f32.mrf.mxu0
        %784 = vmatprep.mubr.f32.mxu0 0.0
        %785 = vmatmul.mubr.f32.gmra.mxu0 %v320
        %v786 = vpop.f32.mrf.mxu0
        %v787 = vadd.f32 0.0, %v786
        %v788 = vpop.f32.mrf.mxu0
        %789 = vmatprep.mubr.f32.mxu0 0.0
        %790 = vmatmul.mubr.f32.gmra.mxu0 %v323
        %v791 = vpop.f32.mrf.mxu0
        %v792 = vadd.f32 0.0, %v791
        %v793 = vpop.f32.mrf.mxu0
        %794 = vdwg.mxu0
        %vm795 = vcmask 15360
        %796 = vst.msk [vmem:[%s238] sm:$0xff] %vm795, %v717
        %797 = vst.msk [vmem:[%s238 + $0x8] sm:$0xff] %vm795, %v722
        %798 = vst.msk [vmem:[%s238 + $0x10] sm:$0xff] %vm795, %v727
        %799 = vst.msk [vmem:[%s238 + $0x18] sm:$0xff] %vm795, %v732
        %800 = vst.msk [vmem:[%s238 + $0x20] sm:$0xff] %vm795, %v737
        %801 = vst.msk [vmem:[%s238 + $0x28] sm:$0xff] %vm795, %v742
        %802 = vst.msk [vmem:[%s238 + $0x30] sm:$0xff] %vm795, %v747
        %803 = vst.msk [vmem:[%s238 + $0x38] sm:$0xff] %vm795, %v752
        %804 = vst.msk [vmem:[%s238 + $0x40] sm:$0xff] %vm795, %v757
        %805 = vst.msk [vmem:[%s238 + $0x48] sm:$0xff] %vm795, %v762
        %806 = vst.msk [vmem:[%s238 + $0x50] sm:$0xff] %vm795, %v767
        %807 = vst.msk [vmem:[%s238 + $0x58] sm:$0xff] %vm795, %v772
        %808 = vst.msk [vmem:[%s238 + $0x60] sm:$0xff] %vm795, %v777
        %809 = vst.msk [vmem:[%s238 + $0x68] sm:$0xff] %vm795, %v782
        %810 = vst.msk [vmem:[%s238 + $0x70] sm:$0xff] %vm795, %v787
        %811 = vst.msk [vmem:[%s238 + $0x78] sm:$0xff] %vm795, %v792
        %s812 = sand.u32 %s117, 1
        %s813 = scalar_lea.sflag [#allocation3], %s812
        %s814 = sand.u32 %s117, 1
        %s815 = smul.addr %s814, 128
        %s816 = scalar_lea.vmem [#allocation2], %s815
        %s817 = smul.u32 16, %s20
        %p818 = scmp.lt.s32.totalorder %s817, 31
        %s819 = scalar_select %p818, %s817, 31
        %s820 = smul.addr %s819, 8
        %s821 = scalar_lea.vmem %s5, %s820
        // Predicated region
        $region37: #{tpu_custom_call.1} parent=35 // pred_check
          %p822 = pneg %p127
        $region38: #{tpu_custom_call.1} parent=35 // pred_check_branch
          %824 = sbr.rel (%p822) target = $region40
        $region39: #{tpu_custom_call.1} parent=35 // pred_region
          %s825 = smul.u32 32, %s20
          %s827 = ssub.s32 2048, 2048
          %828 = vsyncadd %s813, %s827
          %s829 = smul.addr %s825, 64
          %s830 = scalar_lea.hbm %s4, %s829
          %s831 = sshll.u32 %s816, 4
          %s832 = int_to_ptr.vmem [resolvable:$true] %s831
          %837 = dma.vmem_to_hbm [thread:$0]  %s832, 2048, %s830, %s813, 64, 64, 4
        $region40: #{tpu_custom_call.1} parent=35 // pred_fallthru
          _
        // Predicated region
        $region41: #{tpu_custom_call.1} parent=35 // pred_check
          %p838 = pneg %p153
        $region42: #{tpu_custom_call.1} parent=35 // pred_check_branch
          %840 = sbr.rel (%p838) target = $region44
        $region43: #{tpu_custom_call.1} parent=35 // pred_region
          %s841 = smul.u32 16, %s20
        $region44: #{tpu_custom_call.1} parent=35 // pred_fallthru
          _
      $region36: #{tpu_custom_call.1} parent=5 // pred_fallthru
        _
      %p842 = scmp.le.s32.totalorder 2, %s15
      // Predicated region
      $region45: #{tpu_custom_call.1} parent=5 // pred_check
        %p843 = pneg %p842
      $region46: #{tpu_custom_call.1} parent=5 // pred_check_branch
        %845 = sbr.rel (%p843) target = $region48
      $region47: #{tpu_custom_call.1} parent=5 // pred_region
        %s846 = ssub.s32 %s15, 2
        // Predicated region
        $region49: #{tpu_custom_call.1} parent=47 // pred_check
          %p847 = pneg %p133
        $region50: #{tpu_custom_call.1} parent=47 // pred_check_branch
          %849 = sbr.rel (%p847) target = $region52
        $region51: #{tpu_custom_call.1} parent=47 // pred_region
          %s850 = sand.u32 %s118, 1
          %s851 = scalar_lea.sflag [#allocation3], %s850
          %s852 = sand.u32 %s118, 1
          %s853 = smul.addr %s852, 128
          %s854 = scalar_lea.vmem [#allocation2], %s853
          %855 = dma.done %s851, 2048
        $region52: #{tpu_custom_call.1} parent=47 // pred_fallthru
          _
        // Predicated region
        $region53: #{tpu_custom_call.1} parent=47 // pred_check
          %p856 = pneg %p159
        $region54: #{tpu_custom_call.1} parent=47 // pred_check_branch
          %858 = sbr.rel (%p856) target = $region56
        $region55: #{tpu_custom_call.1} parent=47 // pred_region
          %s859 = smul.u32 16, %s21
          %p860 = scmp.lt.s32.totalorder %s859, 31
          %s861 = scalar_select %p860, %s859, 31
          %s862 = smul.addr %s861, 8
          %s863 = scalar_lea.vmem %s5, %s862
        $region56: #{tpu_custom_call.1} parent=47 // pred_fallthru
          _
      $region48: #{tpu_custom_call.1} parent=5 // pred_fallthru
        _
    $region6: #{tpu_custom_call.1} parent=1 // loop_footer
      %s19 = sadd.s32 1, %s15
    $region7: #{tpu_custom_call.1} parent=1 // loop_footer_branch
      %14 = sbr.rel target = $region3
    $region8: #{tpu_custom_call.1} parent=1 // loop_exit
      _
    %864 = vsyncpa [#allocation3], 1
    %s865 = scalar_lea.sflag [#allocation3], 1
    %866 = vsyncpa %s865, 1

</llo_original>
